<compile_context>
chip_gen: v5e
topology: v5e:2x2
jax: 0.10.0
libtpu: 0.0.40
codegen_flags: <defaults>
</compile_context>

<pallas_src>
import functools
import math

import jax
import jax.numpy as jnp
from jax.experimental import pallas as pl
from jax.experimental.pallas import tpu as pltpu


# ------------------------------ helpers ------------------------------------

def _pick_tile(dim, candidates):
    """Largest candidate tile that evenly divides `dim`, else the full dim."""
    for c in candidates:
        if dim >= c and dim % c == 0:
            return c
    return dim


def _gelu(x):
    # tanh approximation of GELU (BERT reference uses erf-GELU; ~1e-3 close).
    return 0.5 * x * (1.0 + jnp.tanh(0.7978845608028654 * (x + 0.044715 * x * x * x)))


_MM_PARAMS_3D = pltpu.CompilerParams(
    dimension_semantics=("parallel", "parallel", "arbitrary"),
    vmem_limit_bytes=32 * 1024 * 1024)
_MM_PARAMS_2D = pltpu.CompilerParams(
    dimension_semantics=("parallel", "arbitrary"),
    vmem_limit_bytes=32 * 1024 * 1024)


# -------------------------- tiled linear (bias + act) -----------------------

def _linear_kernel(x_ref, w_ref, b_ref, o_ref, acc_ref, *, activation):
    @pl.when(pl.program_id(2) == 0)
    def _():
        acc_ref[...] = jnp.zeros_like(acc_ref)

    acc_ref[...] += jnp.dot(x_ref[...], w_ref[...],
                            preferred_element_type=jnp.float32)

    @pl.when(pl.program_id(2) == pl.num_programs(2) - 1)
    def _():
        y = acc_ref[...] + b_ref[...]
        if activation == "gelu":
            y = _gelu(y)
        elif activation == "tanh":
            y = jnp.tanh(y)
        o_ref[...] = y.astype(o_ref.dtype)


def linear(x, w, b, activation="none", out_dtype=jnp.bfloat16):
    """(M, K) @ (K, N) + b, tiled over (M, N, K) with fp32 accumulation."""
    M, K = x.shape
    N = w.shape[1]
    tm = _pick_tile(M, (256, 128, 64, 32, 16, 8))
    tn = _pick_tile(N, (512, 256, 128))
    tk = _pick_tile(K, (512, 256, 128))
    grid = (M // tm, N // tn, K // tk)
    return pl.pallas_call(
        functools.partial(_linear_kernel, activation=activation),
        out_shape=jax.ShapeDtypeStruct((M, N), out_dtype),
        grid=grid,
        in_specs=[
            pl.BlockSpec((tm, tk), lambda i, j, k: (i, k)),
            pl.BlockSpec((tk, tn), lambda i, j, k: (k, j)),
            pl.BlockSpec((1, tn), lambda i, j, k: (0, j)),
        ],
        out_specs=pl.BlockSpec((tm, tn), lambda i, j, k: (i, j)),
        scratch_shapes=[pltpu.VMEM((tm, tn), jnp.float32)],
        compiler_params=_MM_PARAMS_3D,
    )(x.astype(jnp.bfloat16), w.astype(jnp.bfloat16),
      b.reshape(1, N).astype(jnp.float32))


# --------------- tiled linear fused with residual-add + LayerNorm -----------

def _linear_res_ln_kernel(x_ref, w_ref, b_ref, res_ref, g_ref, beta_ref,
                          o_ref, acc_ref, *, eps):
    @pl.when(pl.program_id(1) == 0)
    def _():
        acc_ref[...] = jnp.zeros_like(acc_ref)

    acc_ref[...] += jnp.dot(x_ref[...], w_ref[...],
                            preferred_element_type=jnp.float32)

    @pl.when(pl.program_id(1) == pl.num_programs(1) - 1)
    def _():
        # bias + residual add + LayerNorm, all in fp32, fused into the epilogue
        y = acc_ref[...] + b_ref[...] + res_ref[...].astype(jnp.float32)
        mu = jnp.mean(y, axis=-1, keepdims=True)
        yc = y - mu
        var = jnp.mean(yc * yc, axis=-1, keepdims=True)
        y = (yc * jax.lax.rsqrt(var + eps)) * g_ref[...] + beta_ref[...]
        o_ref[...] = y.astype(o_ref.dtype)


def linear_residual_layernorm(x, w, b, residual, gamma, beta, eps=1e-12,
                              out_dtype=jnp.bfloat16):
    """LayerNorm(residual + x @ w + b); N (=hidden) kept whole for the LN."""
    M, K = x.shape
    N = w.shape[1]
    tm = _pick_tile(M, (256, 128, 64, 32, 16, 8))
    tk = _pick_tile(K, (512, 256, 128))
    grid = (M // tm, K // tk)
    return pl.pallas_call(
        functools.partial(_linear_res_ln_kernel, eps=eps),
        out_shape=jax.ShapeDtypeStruct((M, N), out_dtype),
        grid=grid,
        in_specs=[
            pl.BlockSpec((tm, tk), lambda i, k: (i, k)),
            pl.BlockSpec((tk, N), lambda i, k: (k, 0)),
            pl.BlockSpec((1, N), lambda i, k: (0, 0)),
            pl.BlockSpec((tm, N), lambda i, k: (i, 0)),
            pl.BlockSpec((1, N), lambda i, k: (0, 0)),
            pl.BlockSpec((1, N), lambda i, k: (0, 0)),
        ],
        out_specs=pl.BlockSpec((tm, N), lambda i, k: (i, 0)),
        scratch_shapes=[pltpu.VMEM((tm, N), jnp.float32)],
        compiler_params=_MM_PARAMS_2D,
    )(x.astype(jnp.bfloat16), w.astype(jnp.bfloat16),
      b.reshape(1, N).astype(jnp.float32),
      residual,
      gamma.reshape(1, N).astype(jnp.float32),
      beta.reshape(1, N).astype(jnp.float32))


# ----------------------- standalone LayerNorm (embeddings) ------------------

def _layernorm_kernel(x_ref, g_ref, b_ref, o_ref, *, eps):
    x = x_ref[...].astype(jnp.float32)
    mu = jnp.mean(x, axis=-1, keepdims=True)
    xc = x - mu
    var = jnp.mean(xc * xc, axis=-1, keepdims=True)
    y = (xc * jax.lax.rsqrt(var + eps)) * g_ref[...] + b_ref[...]
    o_ref[...] = y.astype(o_ref.dtype)


def layernorm(x, gamma, beta, eps=1e-12, out_dtype=jnp.bfloat16):
    M, H = x.shape
    tm = _pick_tile(M, (512, 256, 128, 64, 32, 16, 8))
    return pl.pallas_call(
        functools.partial(_layernorm_kernel, eps=eps),
        out_shape=jax.ShapeDtypeStruct((M, H), out_dtype),
        grid=(M // tm,),
        in_specs=[
            pl.BlockSpec((tm, H), lambda i: (i, 0)),
            pl.BlockSpec((1, H), lambda i: (0, 0)),
            pl.BlockSpec((1, H), lambda i: (0, 0)),
        ],
        out_specs=pl.BlockSpec((tm, H), lambda i: (i, 0)),
        compiler_params=pltpu.CompilerParams(
            dimension_semantics=("parallel",)),
    )(x, gamma.reshape(1, H).astype(jnp.float32),
      beta.reshape(1, H).astype(jnp.float32))


# ------------------------------ self-attention -------------------------------

def _attention_kernel(q_ref, k_ref, v_ref, bias_ref, o_ref, *, n_heads,
                      head_dim, scale):
    bias = bias_ref[0]                  # (1, S) additive mask, broadcasts rows
    q = q_ref[...]                      # (S, H) bf16
    k = k_ref[...]
    v = v_ref[...]
    ctx = []
    for h in range(n_heads):            # statically unrolled over heads
        sl = slice(h * head_dim, (h + 1) * head_dim)
        qh, kh, vh = q[:, sl], k[:, sl], v[:, sl]
        # contract the shared head_dim axis directly (no explicit k.T)
        s = jax.lax.dot_general(qh, kh, (((1,), (1,)), ((), ())),
                                preferred_element_type=jnp.float32)
        s = s * scale + bias
        s = s - jnp.max(s, axis=-1, keepdims=True)
        p = jnp.exp(s)
        p = p * pl.reciprocal(jnp.sum(p, axis=-1, keepdims=True), approx=True)
        ctx.append(jnp.dot(p.astype(vh.dtype), vh,
                           preferred_element_type=jnp.float32))
    # one lane-dense (S, H) store for all heads
    o_ref[...] = jnp.concatenate(ctx, axis=-1).astype(o_ref.dtype)


def attention(qkv, mask_bias, *, batch, seq, hidden, n_heads):
    """qkv: (B*S, 3H) bf16 laid out [Q | K | V]; mask_bias: (B, 1, S) fp32."""
    # TODO(synk): for very long sequences, tile the KV axis flash-style with
    # running max/sum scratch instead of materializing the full (S, S) scores.
    head_dim = hidden // n_heads
    scale = 1.0 / math.sqrt(head_dim)

    def qkv_spec(col):
        return pl.BlockSpec((seq, hidden), lambda b, c=col: (b, c))

    return pl.pallas_call(
        functools.partial(_attention_kernel, n_heads=n_heads,
                          head_dim=head_dim, scale=scale),
        out_shape=jax.ShapeDtypeStruct((batch * seq, hidden), jnp.bfloat16),
        grid=(batch,),
        in_specs=[qkv_spec(0), qkv_spec(1), qkv_spec(2),
                  pl.BlockSpec((1, 1, seq), lambda b: (b, 0, 0))],
        out_specs=pl.BlockSpec((seq, hidden), lambda b: (b, 0)),
        compiler_params=pltpu.CompilerParams(
            dimension_semantics=("parallel",)),
    )(qkv, qkv, qkv, mask_bias)


# ----------------------- pooler + classifier (fused, tiny) -------------------

def _pooler_classifier_kernel(x_ref, wp_ref, bp_ref, wc_ref, bc_ref, o_ref):
    p = jnp.tanh(jnp.dot(x_ref[...], wp_ref[...],
                         preferred_element_type=jnp.float32) + bp_ref[...])
    # dr_rate is None (module default) -> dropout is the identity here.
    # TODO(synk): nn.Dropout(p=dr_rate) training-mode randomness not reproduced.
    y = jnp.dot(p.astype(wc_ref.dtype), wc_ref[...],
                preferred_element_type=jnp.float32) + bc_ref[...]
    o_ref[...] = y.astype(o_ref.dtype)


def pooler_classifier(cls_tok, wp, bp, wc_padded, bc_padded):
    B, H = cls_tok.shape
    Np = wc_padded.shape[1]     # classifier output padded to a 128-lane slab
    return pl.pallas_call(
        _pooler_classifier_kernel,
        out_shape=jax.ShapeDtypeStruct((B, Np), jnp.float32),
    )(cls_tok.astype(jnp.bfloat16), wp.astype(jnp.bfloat16),
      bp.reshape(1, H).astype(jnp.float32), wc_padded.astype(jnp.bfloat16),
      bc_padded.reshape(1, Np).astype(jnp.float32))


# --------------------------- parameter construction -------------------------

def init_params(key, *, vocab, max_pos, type_vocab, hidden, n_layers, n_heads,
                intermediate, num_classes):
    ks = iter(jax.random.split(key, 3 + 4 * n_layers + 2))

    def w(shape, dtype=jnp.bfloat16):
        return (0.02 * jax.random.normal(next(ks), shape,
                                         dtype=jnp.float32)).astype(dtype)

    lane_classes = max(128, ((num_classes + 127) // 128) * 128)
    cls_w = w((hidden, num_classes), jnp.float32)
    cls_w_pad = jnp.pad(cls_w, ((0, 0), (0, lane_classes - num_classes)))
    cls_b_pad = jnp.zeros((lane_classes,), jnp.float32)

    params = {
        "num_classes": num_classes,
        "word_emb": w((vocab, hidden), jnp.float32),
        "pos_emb": w((max_pos, hidden), jnp.float32),
        "type_emb": w((type_vocab, hidden), jnp.float32),
        "emb_ln_g": jnp.ones((hidden,), jnp.float32),
        "emb_ln_b": jnp.zeros((hidden,), jnp.float32),
        "layers": [],
        "pool_w": w((hidden, hidden)),
        "pool_b": jnp.zeros((hidden,), jnp.float32),
        "cls_w_pad": cls_w_pad.astype(jnp.bfloat16),
        "cls_b_pad": cls_b_pad,
    }
    for _ in range(n_layers):
        lp = {
            # fused Q|K|V projection weight
            "w_qkv": w((hidden, 3 * hidden)),
            "b_qkv": jnp.zeros((3 * hidden,), jnp.float32),
            "wo": w((hidden, hidden)), "bo": jnp.zeros((hidden,), jnp.float32),
            "ln1_g": jnp.ones((hidden,), jnp.float32),
            "ln1_b": jnp.zeros((hidden,), jnp.float32),
            "wi": w((hidden, intermediate)),
            "bi": jnp.zeros((intermediate,), jnp.float32),
            "wo2": w((intermediate, hidden)),
            "bo2": jnp.zeros((hidden,), jnp.float32),
            "ln2_g": jnp.ones((hidden,), jnp.float32),
            "ln2_b": jnp.zeros((hidden,), jnp.float32),
        }
        params["layers"].append(lp)
    return params


# ------------------------------- forward pass --------------------------------

def bert_classifier_forward(params, token_ids, valid_length, segment_ids,
                            *, n_heads):
    B, S = token_ids.shape
    H = params["word_emb"].shape[1]

    # gen_attention_mask: attention_mask[i][:valid_length[i]] = 1
    attn_mask = (jnp.arange(S)[None, :] < valid_length[:, None]).astype(jnp.float32)
    mask_bias = ((1.0 - attn_mask) * -10000.0).reshape(B, 1, S)

    # BERT embeddings (data-dependent gathers stay in XLA) + Pallas LayerNorm.
    # TODO(synk): the embedding gathers could also be a DMA-gather Pallas kernel.
    x = (params["word_emb"][token_ids]
         + params["pos_emb"][:S][None, :, :]
         + params["type_emb"][segment_ids.astype(jnp.int32)])
    x = layernorm(x.reshape(B * S, H), params["emb_ln_g"], params["emb_ln_b"])

    for lp in params["layers"]:
        qkv = linear(x, lp["w_qkv"], lp["b_qkv"])                    # (B*S, 3H)
        ctx = attention(qkv, mask_bias, batch=B, seq=S, hidden=H,
                        n_heads=n_heads)                             # (B*S, H)
        x = linear_residual_layernorm(ctx, lp["wo"], lp["bo"], x,
                                      lp["ln1_g"], lp["ln1_b"])
        inter = linear(x, lp["wi"], lp["bi"], activation="gelu")
        x = linear_residual_layernorm(inter, lp["wo2"], lp["bo2"], x,
                                      lp["ln2_g"], lp["ln2_b"])

    cls_tok = x.reshape(B, S, H)[:, 0, :]                            # (B, H)
    out_padded = pooler_classifier(cls_tok, params["pool_w"], params["pool_b"],
                                   params["cls_w_pad"], params["cls_b_pad"])
    return out_padded[:, :params["num_classes"]]


# ----------------------------------- main ------------------------------------

if __name__ == "__main__":
    B, S = 2, 8
    HIDDEN, N_HEADS, N_LAYERS, INTER = 128, 4, 2, 256
    VOCAB, MAX_POS, TYPE_VOCAB, NUM_CLASSES = 50, 16, 2, 6

    root = jax.random.PRNGKey(0)
    k_par, k_tok, k_seg = jax.random.split(root, 3)

    params = init_params(k_par, vocab=VOCAB, max_pos=MAX_POS,
                         type_vocab=TYPE_VOCAB, hidden=HIDDEN,
                         n_layers=N_LAYERS, n_heads=N_HEADS,
                         intermediate=INTER, num_classes=NUM_CLASSES)

    token_ids = jax.random.randint(k_tok, (B, S), 0, VOCAB, dtype=jnp.int32)
    segment_ids = jax.random.randint(k_seg, (B, S), 0, TYPE_VOCAB, dtype=jnp.int32)
    valid_length = jnp.array([S, 5], dtype=jnp.int32)

    logits = bert_classifier_forward(params, token_ids, valid_length,
                                     segment_ids, n_heads=N_HEADS)
    logits = jax.block_until_ready(logits)
    assert logits.shape == (B, NUM_CLASSES)
    assert bool(jnp.all(jnp.isfinite(logits)))
    print("KERNEL_OK")
</pallas_src>

<mosaic_0001>
module attributes {stable_mosaic.version = 11 : i64} {
  func.func @_layernorm_kernel(%arg0: i32, %arg1: memref<16x128xf32, #tpu.memory_space<vmem>>, %arg2: memref<1x128xf32, #tpu.memory_space<vmem>>, %arg3: memref<1x128xf32, #tpu.memory_space<vmem>>, %arg4: memref<16x128xbf16, #tpu.memory_space<vmem>>) attributes {dimension_semantics = [#tpu.dimension_semantics<parallel>], iteration_bounds = array<i64: 1>, scalar_prefetch = 0 : i64, scratch_operands = 0 : i64, tpu.core_type = #tpu.core_type<tc>, window_params = [{transform_indices = @transform_0, window_bounds = array<i64: 16, 128>}, {pipeline_mode = #tpu.pipeline_mode<synchronous>, transform_indices = @transform_1, window_bounds = array<i64: 1, 128>}, {pipeline_mode = #tpu.pipeline_mode<synchronous>, transform_indices = @transform_2, window_bounds = array<i64: 1, 128>}, {transform_indices = @transform_3, window_bounds = array<i64: 16, 128>}]} {
    %c0 = arith.constant 0 : index
    %c0_0 = arith.constant 0 : index
    %0 = vector.load %arg1[%c0, %c0_0] : memref<16x128xf32, #tpu.memory_space<vmem>>, vector<16x128xf32>
    %cst = arith.constant dense<0.000000e+00> : vector<16xf32>
    %1 = vector.multi_reduction <add>, %0, %cst [1] : vector<16x128xf32> to vector<16xf32>
    %2 = vector.shape_cast %1 : vector<16xf32> to vector<16x1xf32>
    %cst_1 = arith.constant 1.280000e+02 : f32
    %3 = vector.broadcast %cst_1 : f32 to vector<16x1xf32>
    %4 = arith.divf %2, %3 : vector<16x1xf32>
    %5 = vector.broadcast %4 : vector<16x1xf32> to vector<16x128xf32>
    %6 = arith.subf %0, %5 : vector<16x128xf32>
    %7 = arith.mulf %6, %6 : vector<16x128xf32>
    %cst_2 = arith.constant dense<0.000000e+00> : vector<16xf32>
    %8 = vector.multi_reduction <add>, %7, %cst_2 [1] : vector<16x128xf32> to vector<16xf32>
    %9 = vector.shape_cast %8 : vector<16xf32> to vector<16x1xf32>
    %cst_3 = arith.constant 1.280000e+02 : f32
    %10 = vector.broadcast %cst_3 : f32 to vector<16x1xf32>
    %11 = arith.divf %9, %10 : vector<16x1xf32>
    %cst_4 = arith.constant 9.99999996E-13 : f32
    %12 = vector.broadcast %cst_4 : f32 to vector<16x1xf32>
    %13 = arith.addf %11, %12 : vector<16x1xf32>
    %14 = math.rsqrt %13 : vector<16x1xf32>
    %15 = vector.broadcast %14 : vector<16x1xf32> to vector<16x128xf32>
    %16 = arith.mulf %6, %15 : vector<16x128xf32>
    %c0_5 = arith.constant 0 : index
    %c0_6 = arith.constant 0 : index
    %17 = vector.load %arg2[%c0_5, %c0_6] : memref<1x128xf32, #tpu.memory_space<vmem>>, vector<1x128xf32>
    %18 = vector.broadcast %17 : vector<1x128xf32> to vector<16x128xf32>
    %19 = arith.mulf %16, %18 : vector<16x128xf32>
    %c0_7 = arith.constant 0 : index
    %c0_8 = arith.constant 0 : index
    %20 = vector.load %arg3[%c0_7, %c0_8] : memref<1x128xf32, #tpu.memory_space<vmem>>, vector<1x128xf32>
    %21 = vector.broadcast %20 : vector<1x128xf32> to vector<16x128xf32>
    %22 = arith.addf %19, %21 : vector<16x128xf32>
    %23 = arith.truncf %22 : vector<16x128xf32> to vector<16x128xbf16>
    %c0_9 = arith.constant 0 : index
    %c0_10 = arith.constant 0 : index
    %24 = vector.load %arg4[%c0_9, %c0_10] : memref<16x128xbf16, #tpu.memory_space<vmem>>, vector<16x128xbf16>
    tpu.vector_store %arg4[%c0_9, %c0_10], %23 {strides = array<i32>} : memref<16x128xbf16, #tpu.memory_space<vmem>>, vector<16x128xbf16>,
    return
  }
  func.func @transform_0(%arg0: i32) -> (i32, i32) {
    %c0_i32 = arith.constant 0 : i32
    %c0_i32_0 = arith.constant 0 : i32
    return %arg0, %c0_i32 : i32, i32
  }
  func.func @transform_1(%arg0: i32) -> (i32, i32) {
    %c0_i32 = arith.constant 0 : i32
    %c0_i32_0 = arith.constant 0 : i32
    %c0_i32_1 = arith.constant 0 : i32
    return %c0_i32, %c0_i32_0 : i32, i32
  }
  func.func @transform_2(%arg0: i32) -> (i32, i32) {
    %c0_i32 = arith.constant 0 : i32
    %c0_i32_0 = arith.constant 0 : i32
    %c0_i32_1 = arith.constant 0 : i32
    return %c0_i32, %c0_i32_0 : i32, i32
  }
  func.func @transform_3(%arg0: i32) -> (i32, i32) {
    %c0_i32 = arith.constant 0 : i32
    %c0_i32_0 = arith.constant 0 : i32
    return %arg0, %c0_i32 : i32, i32
  }
}

</mosaic_0001>

<llo_original>
// kernel: tpu_custom_call.1
$region0: #{tpu_custom_call.1}
  #allocation0 [shape = 'u32[]', space=smem, size = 0x4, offset = 0x4, fixed_abs, tag = 'smem constant byte address 0x4 - core index']
  #allocation1 [shape = 'u32[72,128]{1,0:T(1,128)}', space=vmem, size = 0x9000, scoped, tag = 'internal scratch']
  %s0 = inlined_call_operand.hbm [shape: f32[16,128], index: 0, kind: input, shape index: {}]
  %s1 = inlined_call_operand.hbm [shape: f32[1,128], index: 1, kind: input, shape index: {}]
  %s2 = inlined_call_operand.vmem [shape: f32[1,128], index: 2, kind: input, shape index: {}]
  %s3 = inlined_call_operand.hbm [shape: bf16[16,128], index: 3, kind: output, shape index: {}]
  %s4 = sld [smem:[#allocation0]]
  $region30: #{tpu_custom_call.1} parent=0
    _
  %s6 = ssub.s32 1, %s4
  %s7 = scalar_select 0, %s6, %s4
  $region1: #{tpu_custom_call.1} parent=0
    #allocation2 [shape = 'u8[8192]{0}', space=vmem, size = 0x2000, scoped, tag = 'input window, operand 0, single buffered']
    #allocation3 [shape = 's32[1]{0}', space=sflag, size = 0x4, scoped, tag = 'scoped memory for tpu_custom_call.1']
    #allocation4 [shape = 's32[1]{0}', space=sflag, size = 0x4, scoped, tag = 'scoped memory for tpu_custom_call.1']
    #allocation5 [shape = 'u8[512]{0}', space=vmem, size = 0x400, scoped, tag = 'input window, operand 1, single buffered']
    #allocation6 [shape = 's32[1]{0}', space=sflag, size = 0x4, scoped, tag = 'scoped memory for tpu_custom_call.1']
    #allocation7 [shape = 'u8[4096]{0}', space=vmem, size = 0x1000, scoped, tag = 'output window, operand 0, single buffered']
    %8 = vsyncpa [#allocation3], 0
    %9 = vsyncpa [#allocation6], 0
    %10 = vsyncpa [#allocation4], 0
    // Predicated region
    $region2: #{tpu_custom_call.1} parent=1 // pred_check
      _
    $region3: #{tpu_custom_call.1} parent=1 // pred_check_branch
      %12 = sbr.rel (0) target = $region5
    $region4: #{tpu_custom_call.1} parent=1 // pred_region
      %14 = vsyncadd [#allocation3], 0
      %s15 = sshll.u32 %s0, 4
      %s16 = int_to_ptr.hbm [resolvable:$true] %s15
      %s17 = sshll.u32 [#allocation2], 4
      %s18 = int_to_ptr.vmem [resolvable:$true] %s17
      %23 = dma.hbm_to_vmem [thread:$0]  %s16, 256, %s18, [#allocation3], 128, 128, 8
    $region5: #{tpu_custom_call.1} parent=1 // pred_fallthru
      _
    // Predicated region
    $region6: #{tpu_custom_call.1} parent=1 // pred_check
      _
    $region7: #{tpu_custom_call.1} parent=1 // pred_check_branch
      %25 = sbr.rel (0) target = $region9
    $region8: #{tpu_custom_call.1} parent=1 // pred_region
      %27 = vsyncadd [#allocation6], 0
      %s29 = sshll.u32 %s1, 4
      %s30 = int_to_ptr.hbm [resolvable:$true] %s29
      %s31 = sshll.u32 [#allocation5], 4
      %s32 = int_to_ptr.vmem [resolvable:$true] %s31
      %34 = dma.hbm_to_vmem [thread:$0]  %s30, 16, %s32, [#allocation6]
    $region9: #{tpu_custom_call.1} parent=1 // pred_fallthru
      _
    // Predicated region
    $region10: #{tpu_custom_call.1} parent=1 // pred_check
      _
    $region11: #{tpu_custom_call.1} parent=1 // pred_check_branch
      %36 = sbr.rel (0) target = $region13
    $region12: #{tpu_custom_call.1} parent=1 // pred_region
      _
    $region13: #{tpu_custom_call.1} parent=1 // pred_fallthru
      _
    // Predicated region
    $region14: #{tpu_custom_call.1} parent=1 // pred_check
      _
    $region15: #{tpu_custom_call.1} parent=1 // pred_check_branch
      %38 = sbr.rel (0) target = $region17
    $region16: #{tpu_custom_call.1} parent=1 // pred_region
      %40 = dma.done [#allocation3], 256
    $region17: #{tpu_custom_call.1} parent=1 // pred_fallthru
      _
    // Predicated region
    $region18: #{tpu_custom_call.1} parent=1 // pred_check
      _
    $region19: #{tpu_custom_call.1} parent=1 // pred_check_branch
      %42 = sbr.rel (0) target = $region21
    $region20: #{tpu_custom_call.1} parent=1 // pred_region
      %44 = dma.done [#allocation6], 16
    $region21: #{tpu_custom_call.1} parent=1 // pred_fallthru
      _
    %v45 = vld [vmem:[#allocation2] sm:$0xff]
    %v46 = vld [vmem:[#allocation2 + $0x8] sm:$0xff]
    %47 = vadd.xlane.f32.xlu0 %v45
    %v48 = vpop.xlane.xlu0 %47
    %49 = vadd.xlane.f32.xlu0 %v46
    %v50 = vpop.xlane.xlu0 %49
    %v51 = vrcp.pop 128.0
    %v52 = vmul.f32 128.0, %v51
    %v53 = vsub.f32 1.0, %v52
    %v54 = vmul.f32 %v51, %v53
    %v55 = vadd.f32 %v51, %v54
    %vm56 = vweird.f32 %v51
    %v57 = vsel %vm56, %v51, %v55
    %v58 = vmul.f32 %v48, %v57
    %v59 = vmul.f32 %v50, %v57
    %v60 = vsub.f32 %v45, %v58
    %v61 = vsub.f32 %v46, %v59
    %v62 = vmul.f32 %v60, %v60
    %v63 = vmul.f32 %v61, %v61
    %64 = vadd.xlane.f32.xlu0 %v62
    %v65 = vpop.xlane.xlu0 %64
    %66 = vadd.xlane.f32.xlu0 %v63
    %v67 = vpop.xlane.xlu0 %66
    %v68 = vmul.f32 %v65, %v57
    %v69 = vmul.f32 %v67, %v57
    %v70 = vadd.f32 %v68, 1e-12
    %v71 = vadd.f32 %v69, 1e-12
    %v72 = vrsqrt.pop %v70
    %v73 = vmul.f32 %v72, %v70
    %v74 = vmul.f32 %v73, %v72
    %v75 = vmul.f32 0.5, %v74
    %v76 = vsub.f32 1.5, %v75
    %v77 = vmul.f32 %v72, %v76
    %vm78 = vweird.f32 %v70
    %vm79 = vweird.f32 %v72
    %vm80 = vmor %vm78, %vm79
    %v81 = vsel %vm80, %v72, %v77
    %v82 = vrsqrt.pop %v71
    %v83 = vmul.f32 %v82, %v71
    %v84 = vmul.f32 %v83, %v82
    %v85 = vmul.f32 0.5, %v84
    %v86 = vsub.f32 1.5, %v85
    %v87 = vmul.f32 %v82, %v86
    %vm88 = vweird.f32 %v71
    %vm89 = vweird.f32 %v82
    %vm90 = vmor %vm88, %vm89
    %v91 = vsel %vm90, %v82, %v87
    %v92 = vmul.f32 %v60, %v81
    %v93 = vmul.f32 %v61, %v91
    %v94 = vld [vmem:[#allocation5] sm:$0x1]
    %v96 = vperm.slane %v94, 0
    %v98 = vmul.f32 %v92, %v96
    %v99 = vmul.f32 %v93, %v96
    %v100 = vld [vmem:[%s2] sm:$0x1]
    %v102 = vperm.slane %v100, 0
    %v104 = vadd.f32 %v98, %v102
    %v105 = vadd.f32 %v99, %v102
    %v106 = vpack.c.bf16 %v104, %v104
    %v107 = vpack.c.bf16 %v105, %v105
    %108 = vst [vmem:[#allocation7] sm:$0xf] %v106
    %109 = vst [vmem:[#allocation7 + $0x4] sm:$0xf] %v107
    // Predicated region
    $region22: #{tpu_custom_call.1} parent=1 // pred_check
      _
    $region23: #{tpu_custom_call.1} parent=1 // pred_check_branch
      %111 = sbr.rel (0) target = $region25
    $region24: #{tpu_custom_call.1} parent=1 // pred_region
      %113 = vsyncadd [#allocation4], 0
      %s114 = sshll.u32 [#allocation7], 4
      %s115 = int_to_ptr.vmem [resolvable:$true] %s114
      %s116 = sshll.u32 %s3, 4
      %s117 = int_to_ptr.hbm [resolvable:$true] %s116
      %122 = dma.vmem_to_hbm [thread:$0]  %s115, 128, %s117, [#allocation4], 64, 64, 4
    $region25: #{tpu_custom_call.1} parent=1 // pred_fallthru
      _
    // Predicated region
    $region26: #{tpu_custom_call.1} parent=1 // pred_check
      _
    $region27: #{tpu_custom_call.1} parent=1 // pred_check_branch
      %124 = sbr.rel (0) target = $region29
    $region28: #{tpu_custom_call.1} parent=1 // pred_region
      %126 = dma.done [#allocation4], 128
    $region29: #{tpu_custom_call.1} parent=1 // pred_fallthru
      _
    %127 = vsyncpa [#allocation3], 1
    %128 = vsyncpa [#allocation6], 1
    %129 = vsyncpa [#allocation4], 1

</llo_original>
